<compile_context>
chip_gen: v5e
topology: v5e:2x2
jax: 0.10.0
libtpu: 0.0.40
codegen_flags: <defaults>
</compile_context>

<pallas_src>
import functools

import jax
import jax.numpy as jnp
from jax.experimental import pallas as pl
from jax.experimental.pallas import tpu as pltpu


# ----------------------------------------------------------------------------
# capability probe: single-buffered (pipeline_mode=pl.Buffered(1)) BlockSpecs
# ----------------------------------------------------------------------------

_SINGLE_BUFFER_OK = None


def _probe_single_buffering():
    """Compile+run a trivial kernel with pl.Buffered(1); fall back if the
    running JAX/Mosaic rejects single-buffered input BlockSpecs."""
    try:
        def k(x_ref, o_ref):
            o_ref[...] = x_ref[...] + 1.0

        x = jnp.zeros((8, 128), jnp.float32)
        out = pl.pallas_call(
            k,
            out_shape=jax.ShapeDtypeStruct((8, 128), jnp.float32),
            grid=(1,),
            in_specs=[pl.BlockSpec((8, 128), lambda i: (0, 0),
                                   pipeline_mode=pl.Buffered(1))],
            out_specs=pl.BlockSpec((8, 128), lambda i: (0, 0)),
        )(x)
        jax.block_until_ready(out)
        return True
    except Exception:
        return False


def _single_buffer_supported():
    global _SINGLE_BUFFER_OK
    if _SINGLE_BUFFER_OK is None:
        _SINGLE_BUFFER_OK = _probe_single_buffering()
    return _SINGLE_BUFFER_OK


def _invariant_spec(block_shape, index_map):
    """BlockSpec for a grid-(mostly-)invariant operand: single-buffered when
    supported (Pallas skips the re-DMA on repeated block indices either way,
    but by default still allocates two VMEM buffers)."""
    if _single_buffer_supported():
        return pl.BlockSpec(block_shape, index_map, pipeline_mode=pl.Buffered(1))
    return pl.BlockSpec(block_shape, index_map)


# ----------------------------------------------------------------------------
# tile-size helpers (no "split for megacore" preference: one MXU-full tile on
# one core beats two starved tiles split across cores)
# ----------------------------------------------------------------------------

def _row_tile(m, cap=512):
    """Largest sublane-aligned (multiple of 8) divisor of m <= cap; m itself
    if m <= cap (or if no aligned divisor exists)."""
    if m <= cap:
        return m
    best = None
    for t in range(8, cap + 1, 8):
        if m % t == 0:
            best = t
    return best if best is not None else m


def _col_tile(n, cap=2048):
    """Largest lane-aligned (multiple of 128) divisor of n <= cap; n itself if
    n <= cap (or if no aligned divisor exists)."""
    if n <= cap:
        return n
    best = None
    for t in range(128, cap + 1, 128):
        if n % t == 0:
            best = t
    return best if best is not None else n


# ----------------------------------------------------------------------------
# Kernel 1: fused vision patch-embed + connector
#   out = (patches @ w_patch + b_patch) @ w_conn + b_conn
# The (tm, vision_dim) intermediate never touches HBM.
# ----------------------------------------------------------------------------

def _vision_connector_kernel(patch_ref, wp_ref, bp_ref, wc_ref, bc_ref, o_ref):
    # patch: (tm, Kp) bf16, wp: (Kp, Dv) bf16, bp: (1, Dv) f32,
    # wc: (Dv, Dl) bf16,  bc: (1, Dl) f32  ->  o: (tm, Dl) bf16
    mid = jnp.dot(patch_ref[...], wp_ref[...],
                  preferred_element_type=jnp.float32) + bp_ref[...]
    proj = jnp.dot(mid.astype(jnp.bfloat16), wc_ref[...],
                   preferred_element_type=jnp.float32) + bc_ref[...]
    o_ref[...] = proj.astype(o_ref.dtype)


def vision_connector(patches, w_patch, b_patch, w_conn, b_conn):
    M, Kp = patches.shape
    Kp2, Dv = w_patch.shape
    Dv2, Dl = w_conn.shape
    assert Kp == Kp2 and Dv == Dv2
    tm = _row_tile(M)
    assert M % tm == 0

    # rough per-step VMEM need (bf16 operands, weights single-buffered)
    blk_bytes = (2 * tm * Kp * 2 + Kp * Dv * 2 + Dv * 4 + Dv * Dl * 2 + Dl * 4
                 + 2 * tm * Dl * 2)
    vmem_limit = int(min(64 * 2 ** 20, max(16 * 2 ** 20, 4 * blk_bytes)))

    cost = pl.CostEstimate(
        flops=2 * M * Kp * Dv + 2 * M * Dv * Dl,
        transcendentals=0,
        bytes_accessed=int(M * Kp * 2 + Kp * Dv * 2 + Dv * Dl * 2
                           + Dv * 4 + Dl * 4 + M * Dl * 2))

    return pl.pallas_call(
        _vision_connector_kernel,
        out_shape=jax.ShapeDtypeStruct((M, Dl), jnp.bfloat16),
        grid_spec=pltpu.PrefetchScalarGridSpec(
            num_scalar_prefetch=0,
            grid=(M // tm,),
            in_specs=[
                pl.BlockSpec((tm, Kp), lambda i: (i, 0)),
                _invariant_spec((Kp, Dv), lambda i: (0, 0)),
                _invariant_spec((1, Dv), lambda i: (0, 0)),
                _invariant_spec((Dv, Dl), lambda i: (0, 0)),
                _invariant_spec((1, Dl), lambda i: (0, 0)),
            ],
            out_specs=pl.BlockSpec((tm, Dl), lambda i: (i, 0)),
        ),
        compiler_params=pltpu.CompilerParams(
            dimension_semantics=("parallel",),
            vmem_limit_bytes=vmem_limit),
        cost_estimate=cost,
    )(patches, w_patch, b_patch.reshape(1, Dv), w_conn, b_conn.reshape(1, Dl))


# ----------------------------------------------------------------------------
# Kernel 2: fused per-batch concat-select + RMSNorm + lm_head
#   grid = (B, vocab_tiles), BOTH axes "parallel" (no cross-tile state: the
#   cheap RMSNorm is recomputed per vocab tile).  Per-batch image-first flag is
#   scalar-prefetched into SMEM; routing is two pl.when-guarded static-slice
#   stores of the two matmul results into the lane-dense output tile — the two
#   (B,T,D) concats + (B,T,D) select buffer of the PyTorch code never exist.
# ----------------------------------------------------------------------------

def _fused_embed_rmsnorm_head_kernel(flag_ref, img_ref, txt_ref, gamma_ref,
                                     wlm_ref, out_ref, *, n_patches, seq_len,
                                     eps):
    b = pl.program_id(0)
    total = n_patches + seq_len
    gamma = gamma_ref[...]                                     # (1, D) f32

    def rmsnorm_bf16(x):
        x = x.astype(jnp.float32)
        var = jnp.mean(x * x, axis=-1, keepdims=True)
        return (x * jax.lax.rsqrt(var + eps) * gamma).astype(jnp.bfloat16)

    # Recomputed per vocab tile: O(T*D) vs the O(T*D*tn) matmul => negligible,
    # and it keeps the vocab axis free of cross-tile scratch state.
    xn_img = rmsnorm_bf16(img_ref[0])                          # (nP, D) bf16
    xn_txt = rmsnorm_bf16(txt_ref[0])                          # (S,  D) bf16

    w = wlm_ref[...]                                           # (D, tn) bf16
    logits_img = jnp.dot(xn_img, w, preferred_element_type=jnp.float32)
    logits_txt = jnp.dot(xn_txt, w, preferred_element_type=jnp.float32)

    flag = flag_ref[b]                                         # SMEM scalar

    @pl.when(flag != 0)                                        # image tokens first
    def _():
        out_ref[0, 0:n_patches, :] = logits_img.astype(out_ref.dtype)
        out_ref[0, n_patches:total, :] = logits_txt.astype(out_ref.dtype)

    @pl.when(flag == 0)                                        # text tokens first
    def _():
        out_ref[0, 0:seq_len, :] = logits_txt.astype(out_ref.dtype)
        out_ref[0, seq_len:total, :] = logits_img.astype(out_ref.dtype)


def fused_select_rmsnorm_head(image_first_i32, img_feats, txt_embeds, gamma,
                              w_lm, *, eps=1e-6):
    B, nP, D = img_feats.shape
    B2, S, D2 = txt_embeds.shape
    D3, V = w_lm.shape
    assert B == B2 and D == D2 and D == D3
    # bf16 MXU LHS packs 16 sublanes per vreg: keep both token groups 16-aligned
    assert nP % 16 == 0 and S % 16 == 0, "token counts must be 16-aligned (bf16)"
    T = nP + S
    tn = _col_tile(V)
    assert V % tn == 0

    kernel = functools.partial(_fused_embed_rmsnorm_head_kernel,
                               n_patches=nP, seq_len=S, eps=eps)

    # rough per-step VMEM need (img/txt/gamma single-buffered, w_lm & out x2)
    blk_bytes = (nP * D * 2 + S * D * 2 + D * 4
                 + 2 * D * tn * 2 + 2 * T * tn * 2)
    vmem_limit = int(min(64 * 2 ** 20, max(16 * 2 ** 20, 4 * blk_bytes)))

    n_vtiles = V // tn
    cost = pl.CostEstimate(
        flops=2 * B * T * D * V + 6 * B * T * D * n_vtiles,
        transcendentals=B * T * n_vtiles,
        bytes_accessed=int(B * nP * D * 2 + B * S * D * 2 + D * 4
                           + B * D * V * 2 + B * T * V * 2))

    return pl.pallas_call(
        kernel,
        out_shape=jax.ShapeDtypeStruct((B, T, V), jnp.bfloat16),   # bf16 logits
        grid_spec=pltpu.PrefetchScalarGridSpec(
            num_scalar_prefetch=1,                  # image_first flags -> SMEM
            grid=(B, V // tn),
            in_specs=[
                _invariant_spec((1, nP, D), lambda b, v, flag: (b, 0, 0)),
                _invariant_spec((1, S, D), lambda b, v, flag: (b, 0, 0)),
                _invariant_spec((1, D), lambda b, v, flag: (0, 0)),
                pl.BlockSpec((D, tn), lambda b, v, flag: (0, v)),
            ],
            out_specs=pl.BlockSpec((1, T, tn), lambda b, v, flag: (b, 0, v)),
        ),
        compiler_params=pltpu.CompilerParams(
            dimension_semantics=("parallel", "parallel"),
            vmem_limit_bytes=vmem_limit),
        cost_estimate=cost,
    )(image_first_i32, img_feats, txt_embeds, gamma.reshape(1, D), w_lm)


# ----------------------------------------------------------------------------
# Model (synthetic HyperNetMLLM) — parameter init + forward
# ----------------------------------------------------------------------------

def init_params(key, *, in_channels, patch_size, vision_dim, llm_dim, vocab_size):
    ks = jax.random.split(key, 4)
    patch_in = in_channels * patch_size * patch_size
    scale = lambda fan_in: 1.0 / jnp.sqrt(jnp.float32(fan_in))
    return {
        "patch_size": patch_size,
        # vision tower (patch embedding) — bf16 MXU operands
        "w_patch": (jax.random.normal(ks[0], (patch_in, vision_dim), jnp.float32)
                    * scale(patch_in)).astype(jnp.bfloat16),
        "b_patch": jnp.zeros((vision_dim,), jnp.float32),
        # connector (vision_dim -> llm_dim)
        "w_conn": (jax.random.normal(ks[1], (vision_dim, llm_dim), jnp.float32)
                   * scale(vision_dim)).astype(jnp.bfloat16),
        "b_conn": jnp.zeros((llm_dim,), jnp.float32),
        # llm input embeddings + head
        "embed_table": (jax.random.normal(ks[2], (vocab_size, llm_dim), jnp.float32)
                        * 0.02).astype(jnp.bfloat16),
        "rms_gamma": jnp.ones((llm_dim,), jnp.float32),
        "w_lm": (jax.random.normal(ks[3], (llm_dim, vocab_size), jnp.float32)
                 * scale(llm_dim)).astype(jnp.bfloat16),
    }


def hypernet_mllm_forward(params, input_ids, images, attention_mask=None,
                          labels=None, image_positions=None):
    # TODO(synk): the real vision_tower / llm are externally loaded pretrained
    # networks; they are synthesized here as a patch-embed and a norm+lm_head.
    # `labels` is accepted but ignored (inference path only), matching the
    # behaviour when the wrapped llm is not given labels.
    B, C, H, W = images.shape
    P = params["patch_size"]
    nP = (H // P) * (W // P)

    # TODO(synk): at real image resolutions fold this patchify transpose into
    # the vision kernel's BlockSpec/grid (NHWC input) to avoid an extra HBM
    # round trip of the image tensor.
    patches = images.reshape(B, C, H // P, P, W // P, P)
    patches = patches.transpose(0, 2, 4, 1, 3, 5).reshape(B * nP, C * P * P)
    projected = vision_connector(patches.astype(jnp.bfloat16),
                                 params["w_patch"], params["b_patch"],
                                 params["w_conn"], params["b_conn"])
    llm_dim = projected.shape[-1]
    projected_image_features = projected.reshape(B, nP, llm_dim)

    # image_positions: (B,) ; 0 => image tokens come first in the sequence.
    image_first_mask = (image_positions == 0)

    combined_attention_mask = None
    if attention_mask is not None:
        image_attention_mask = jnp.ones((B, nP), dtype=attention_mask.dtype)
        combined_attention_mask = jnp.where(
            image_first_mask[:, None],
            jnp.concatenate([image_attention_mask, attention_mask], axis=1),
            jnp.concatenate([attention_mask, image_attention_mask], axis=1))

    # TODO(synk): the embedding-row gather could be fused into the head kernel
    # (scalar-prefetch input_ids + manual DMA gather) to drop this (B,S,D)
    # HBM materialization; left to XLA at demo scale.
    text_embeddings = jnp.take(params["embed_table"], input_ids, axis=0)  # (B,S,D)

    logits = fused_select_rmsnorm_head(
        image_first_mask.astype(jnp.int32),
        projected_image_features, text_embeddings,
        params["rms_gamma"], params["w_lm"])

    return {"logits": logits, "attention_mask": combined_attention_mask}


# ----------------------------------------------------------------------------
# Pure-JAX reference (f32) for correctness check
# ----------------------------------------------------------------------------

def _reference_forward(params, input_ids, images, attention_mask, image_positions):
    B, C, H, W = images.shape
    P = params["patch_size"]
    nP = (H // P) * (W // P)
    patches = images.reshape(B, C, H // P, P, W // P, P)
    patches = patches.transpose(0, 2, 4, 1, 3, 5).reshape(B * nP, C * P * P)
    feats = patches @ params["w_patch"].astype(jnp.float32) + params["b_patch"]
    proj = feats @ params["w_conn"].astype(jnp.float32) + params["b_conn"]
    proj = proj.reshape(B, nP, -1)
    txt = params["embed_table"].astype(jnp.float32)[input_ids]
    first = (image_positions == 0)
    comb = jnp.where(first[:, None, None],
                     jnp.concatenate([proj, txt], axis=1),
                     jnp.concatenate([txt, proj], axis=1))
    var = jnp.mean(comb * comb, axis=-1, keepdims=True)
    xn = comb * jax.lax.rsqrt(var + 1e-6) * params["rms_gamma"]
    logits = xn @ params["w_lm"].astype(jnp.float32)
    ia = jnp.ones((B, nP), attention_mask.dtype)
    mask = jnp.where(first[:, None],
                     jnp.concatenate([ia, attention_mask], axis=1),
                     jnp.concatenate([attention_mask, ia], axis=1))
    return logits, mask


# ----------------------------------------------------------------------------
# Driver
# ----------------------------------------------------------------------------

if __name__ == "__main__":
    key = jax.random.PRNGKey(0)
    k_par, k_img, k_ids = jax.random.split(key, 3)

    # Small but lane/sublane-aligned shapes consistent with the module:
    B, C, H, W = 2, 4, 16, 16
    patch_size = 4                       # -> num_patches = 16 (16-aligned)
    vision_dim, llm_dim = 128, 128       # lane-aligned feature dims
    seq_len, vocab_size = 16, 256        # 16-aligned tokens, lane-tiled vocab

    params = init_params(k_par, in_channels=C, patch_size=patch_size,
                         vision_dim=vision_dim, llm_dim=llm_dim,
                         vocab_size=vocab_size)

    images = jax.random.normal(k_img, (B, C, H, W), jnp.float32)           # NCHW
    input_ids = jax.random.randint(k_ids, (B, seq_len), 0, vocab_size)
    attention_mask = jnp.ones((B, seq_len), jnp.int32)
    image_positions = jnp.array([0, 1], dtype=jnp.int32)  # batch 0: image first

    out = hypernet_mllm_forward(params, input_ids, images,
                                attention_mask=attention_mask,
                                labels=None,
                                image_positions=image_positions)
    jax.block_until_ready(out["logits"])
    jax.block_until_ready(out["attention_mask"])

    num_patches = (H // patch_size) * (W // patch_size)
    T = num_patches + seq_len
    assert out["logits"].shape == (B, T, vocab_size)
    assert out["attention_mask"].shape == (B, T)

    # correctness vs pure-JAX reference (bf16 MXU operands + bf16 logits =>
    # loose tolerance; a routing / norm bug would produce O(1) errors)
    ref_logits, ref_mask = _reference_forward(params, input_ids, images,
                                              attention_mask, image_positions)
    max_err = float(jnp.max(jnp.abs(out["logits"].astype(jnp.float32)
                                    - ref_logits)))
    assert max_err < 0.3, f"logits mismatch, max abs err {max_err}"
    assert bool(jnp.all(out["attention_mask"] == ref_mask))

    print("KERNEL_OK")
</pallas_src>

<mosaic_0001>
module attributes {stable_mosaic.version = 11 : i64} {
  func.func @k(%arg0: i32, %arg1: memref<8x128xf32, #tpu.memory_space<vmem>>, %arg2: memref<8x128xf32, #tpu.memory_space<vmem>>) attributes {dimension_semantics = [#tpu.dimension_semantics<arbitrary>], iteration_bounds = array<i64: 1>, scalar_prefetch = 0 : i64, scratch_operands = 0 : i64, tpu.core_type = #tpu.core_type<tc>, window_params = [{pipeline_mode = #tpu.pipeline_mode<synchronous>, transform_indices = @transform_0, window_bounds = array<i64: 8, 128>}, {pipeline_mode = #tpu.pipeline_mode<synchronous>, transform_indices = @transform_1, window_bounds = array<i64: 8, 128>}]} {
    %c0 = arith.constant 0 : index
    %c0_0 = arith.constant 0 : index
    %0 = vector.load %arg1[%c0, %c0_0] : memref<8x128xf32, #tpu.memory_space<vmem>>, vector<8x128xf32>
    %cst = arith.constant 1.000000e+00 : f32
    %1 = vector.broadcast %cst : f32 to vector<8x128xf32>
    %2 = arith.addf %0, %1 : vector<8x128xf32>
    %c0_1 = arith.constant 0 : index
    %c0_2 = arith.constant 0 : index
    %3 = vector.load %arg2[%c0_1, %c0_2] : memref<8x128xf32, #tpu.memory_space<vmem>>, vector<8x128xf32>
    tpu.vector_store %arg2[%c0_1, %c0_2], %2 {strides = array<i32>} : memref<8x128xf32, #tpu.memory_space<vmem>>, vector<8x128xf32>,
    return
  }
  func.func @transform_0(%arg0: i32) -> (i32, i32) {
    %c0_i32 = arith.constant 0 : i32
    %c0_i32_0 = arith.constant 0 : i32
    %c0_i32_1 = arith.constant 0 : i32
    return %c0_i32, %c0_i32_0 : i32, i32
  }
  func.func @transform_1(%arg0: i32) -> (i32, i32) {
    %c0_i32 = arith.constant 0 : i32
    %c0_i32_0 = arith.constant 0 : i32
    %c0_i32_1 = arith.constant 0 : i32
    return %c0_i32, %c0_i32_0 : i32, i32
  }
}

module attributes {stable_mosaic.version = 11 : i64} {
  func.func @_vision_connector_kernel(%arg0: i32, %arg1: memref<32x64xbf16, #tpu.memory_space<vmem>>, %arg2: memref<64x128xbf16, #tpu.memory_space<vmem>>, %arg3: memref<1x128xf32, #tpu.memory_space<vmem>>, %arg4: memref<128x128xbf16, #tpu.memory_space<vmem>>, %arg5: memref<1x128xf32, #tpu.memory_space<vmem>>, %arg6: memref<32x128xbf16, #tpu.memory_space<vmem>>) attributes {dimension_semantics = [#tpu.dimension_semantics<parallel>], iteration_bounds = array<i64: 1>, scalar_prefetch = 0 : i64, scratch_operands = 0 : i64, tpu.core_type = #tpu.core_type<tc>, window_params = [{transform_indices = @transform_0, window_bounds = array<i64: 32, 64>}, {pipeline_mode = #tpu.pipeline_mode<synchronous>, transform_indices = @transform_1, window_bounds = array<i64: 64, 128>}, {pipeline_mode = #tpu.pipeline_mode<synchronous>, transform_indices = @transform_2, window_bounds = array<i64: 1, 128>}, {pipeline_mode = #tpu.pipeline_mode<synchronous>, transform_indices = @transform_3, window_bounds = array<i64: 128, 128>}, {pipeline_mode = #tpu.pipeline_mode<synchronous>, transform_indices = @transform_4, window_bounds = array<i64: 1, 128>}, {transform_indices = @transform_5, window_bounds = array<i64: 32, 128>}]} {
    %c0 = arith.constant 0 : index
    %c0_0 = arith.constant 0 : index
    %0 = vector.load %arg1[%c0, %c0_0] : memref<32x64xbf16, #tpu.memory_space<vmem>>, vector<32x64xbf16>
    %c0_1 = arith.constant 0 : index
    %c0_2 = arith.constant 0 : index
    %1 = vector.load %arg2[%c0_1, %c0_2] : memref<64x128xbf16, #tpu.memory_space<vmem>>, vector<64x128xbf16>
    %cst = arith.constant dense<0.000000e+00> : vector<32x128xf32>
    %2 = tpu.matmul %0, %1, %cst {dimension_numbers = #tpu.dot_dimension_numbers<[1], [0], [0], [1], [0, 0, 1, 1], [], []>} : vector<32x64xbf16>, vector<64x128xbf16>, vector<32x128xf32> -> vector<32x128xf32>
    %c0_3 = arith.constant 0 : index
    %c0_4 = arith.constant 0 : index
    %3 = vector.load %arg3[%c0_3, %c0_4] : memref<1x128xf32, #tpu.memory_space<vmem>>, vector<1x128xf32>
    %4 = vector.broadcast %3 : vector<1x128xf32> to vector<32x128xf32>
    %5 = arith.addf %2, %4 : vector<32x128xf32>
    %6 = arith.truncf %5 : vector<32x128xf32> to vector<32x128xbf16>
    %c0_5 = arith.constant 0 : index
    %c0_6 = arith.constant 0 : index
    %7 = vector.load %arg4[%c0_5, %c0_6] : memref<128x128xbf16, #tpu.memory_space<vmem>>, vector<128x128xbf16>
    %cst_7 = arith.constant dense<0.000000e+00> : vector<32x128xf32>
    %8 = tpu.matmul %6, %7, %cst_7 {dimension_numbers = #tpu.dot_dimension_numbers<[1], [0], [0], [1], [0, 0, 1, 1], [], []>} : vector<32x128xbf16>, vector<128x128xbf16>, vector<32x128xf32> -> vector<32x128xf32>
    %c0_8 = arith.constant 0 : index
    %c0_9 = arith.constant 0 : index
    %9 = vector.load %arg5[%c0_8, %c0_9] : memref<1x128xf32, #tpu.memory_space<vmem>>, vector<1x128xf32>
    %10 = vector.broadcast %9 : vector<1x128xf32> to vector<32x128xf32>
    %11 = arith.addf %8, %10 : vector<32x128xf32>
    %12 = arith.truncf %11 : vector<32x128xf32> to vector<32x128xbf16>
    %c0_10 = arith.constant 0 : index
    %c0_11 = arith.constant 0 : index
    %13 = vector.load %arg6[%c0_10, %c0_11] : memref<32x128xbf16, #tpu.memory_space<vmem>>, vector<32x128xbf16>
    tpu.vector_store %arg6[%c0_10, %c0_11], %12 {strides = array<i32>} : memref<32x128xbf16, #tpu.memory_space<vmem>>, vector<32x128xbf16>,
    return
  }
  func.func @transform_0(%arg0: i32) -> (i32, i32) {
    %c0_i32 = arith.constant 0 : i32
    %c0_i32_0 = arith.constant 0 : i32
    return %arg0, %c0_i32 : i32, i32
  }
  func.func @transform_1(%arg0: i32) -> (i32, i32) {
    %c0_i32 = arith.constant 0 : i32
    %c0_i32_0 = arith.constant 0 : i32
    %c0_i32_1 = arith.constant 0 : i32
    return %c0_i32, %c0_i32_0 : i32, i32
  }
  func.func @transform_2(%arg0: i32) -> (i32, i32) {
    %c0_i32 = arith.constant 0 : i32
    %c0_i32_0 = arith.constant 0 : i32
    %c0_i32_1 = arith.constant 0 : i32
    return %c0_i32, %c0_i32_0 : i32, i32
  }
  func.func @transform_3(%arg0: i32) -> (i32, i32) {
    %c0_i32 = arith.constant 0 : i32
    %c0_i32_0 = arith.constant 0 : i32
    %c0_i32_1 = arith.constant 0 : i32
    return %c0_i32, %c0_i32_0 : i32, i32
  }
  func.func @transform_4(%arg0: i32) -> (i32, i32) {
    %c0_i32 = arith.constant 0 : i32
    %c0_i32_0 = arith.constant 0 : i32
    %c0_i32_1 = arith.constant 0 : i32
    return %c0_i32, %c0_i32_0 : i32, i32
  }
  func.func @transform_5(%arg0: i32) -> (i32, i32) {
    %c0_i32 = arith.constant 0 : i32
    %c0_i32_0 = arith.constant 0 : i32
    return %arg0, %c0_i32 : i32, i32
  }
}

</mosaic_0001>

<llo_original>
// kernel: tpu_custom_call.1
$region0: #{tpu_custom_call.1}
  #allocation0 [shape = 'u32[]', space=smem, size = 0x4, offset = 0x4, fixed_abs, tag = 'smem constant byte address 0x4 - core index']
  #allocation1 [shape = 'u32[72,128]{1,0:T(1,128)}', space=vmem, size = 0x9000, scoped, tag = 'internal scratch']
  %s0 = inlined_call_operand.hbm [shape: f32[8,128], index: 0, kind: input, shape index: {}]
  %s1 = inlined_call_operand.hbm [shape: f32[8,128], index: 1, kind: output, shape index: {}]
  %s2 = sld [smem:[#allocation0]]
  $region18: #{tpu_custom_call.1} parent=0
    _
  %s4 = ssub.s32 1, %s2
  %s5 = scalar_select 0, %s4, %s2
  $region1: #{tpu_custom_call.1} parent=0
    #allocation2 [shape = 'u8[4096]{0}', space=vmem, size = 0x1000, scoped, tag = 'input window, operand 0, single buffered']
    #allocation3 [shape = 's32[1]{0}', space=sflag, size = 0x4, scoped, tag = 'scoped memory for tpu_custom_call.1']
    #allocation4 [shape = 's32[1]{0}', space=sflag, size = 0x4, scoped, tag = 'scoped memory for tpu_custom_call.1']
    #allocation5 [shape = 'u8[4096]{0}', space=vmem, size = 0x1000, scoped, tag = 'output window, operand 0, single buffered']
    %6 = vsyncpa [#allocation3], 0
    %7 = vsyncpa [#allocation4], 0
    // Predicated region
    $region2: #{tpu_custom_call.1} parent=1 // pred_check
      _
    $region3: #{tpu_custom_call.1} parent=1 // pred_check_branch
      %9 = sbr.rel (0) target = $region5
    $region4: #{tpu_custom_call.1} parent=1 // pred_region
      %11 = vsyncadd [#allocation3], 0
      %s13 = sshll.u32 %s0, 4
      %s14 = int_to_ptr.hbm [resolvable:$true] %s13
      %s15 = sshll.u32 [#allocation2], 4
      %s16 = int_to_ptr.vmem [resolvable:$true] %s15
      %18 = dma.hbm_to_vmem [thread:$0]  %s14, 128, %s16, [#allocation3]
    $region5: #{tpu_custom_call.1} parent=1 // pred_fallthru
      _
    // Predicated region
    $region6: #{tpu_custom_call.1} parent=1 // pred_check
      _
    $region7: #{tpu_custom_call.1} parent=1 // pred_check_branch
      %20 = sbr.rel (0) target = $region9
    $region8: #{tpu_custom_call.1} parent=1 // pred_region
      %22 = dma.done [#allocation3], 128
    $region9: #{tpu_custom_call.1} parent=1 // pred_fallthru
      _
    %v23 = vld [vmem:[#allocation2] sm:$0xff]
    %v24 = vadd.f32 %v23, 1.0
    %25 = vst [vmem:[#allocation5] sm:$0xff] %v24
    // Predicated region
    $region10: #{tpu_custom_call.1} parent=1 // pred_check
      _
    $region11: #{tpu_custom_call.1} parent=1 // pred_check_branch
      %27 = sbr.rel (0) target = $region13
    $region12: #{tpu_custom_call.1} parent=1 // pred_region
      %29 = vsyncadd [#allocation4], 0
      %s31 = sshll.u32 [#allocation5], 4
      %s32 = int_to_ptr.vmem [resolvable:$true] %s31
      %s33 = sshll.u32 %s1, 4
      %s34 = int_to_ptr.hbm [resolvable:$true] %s33
      %36 = dma.vmem_to_hbm [thread:$0]  %s32, 128, %s34, [#allocation4]
    $region13: #{tpu_custom_call.1} parent=1 // pred_fallthru
      _
    // Predicated region
    $region14: #{tpu_custom_call.1} parent=1 // pred_check
      _
    $region15: #{tpu_custom_call.1} parent=1 // pred_check_branch
      %38 = sbr.rel (0) target = $region17
    $region16: #{tpu_custom_call.1} parent=1 // pred_region
      %40 = dma.done [#allocation4], 128
    $region17: #{tpu_custom_call.1} parent=1 // pred_fallthru
      _
    %41 = vsyncpa [#allocation3], 1
    %42 = vsyncpa [#allocation4], 1

// kernel: tpu_custom_call.1
$region0: #{tpu_custom_call.1}
  #allocation0 [shape = 'u32[]', space=smem, size = 0x4, offset = 0x4, fixed_abs, tag = 'smem constant byte address 0x4 - core index']
  #allocation1 [shape = 'u32[72,128]{1,0:T(1,128)}', space=vmem, size = 0x9000, scoped, tag = 'internal scratch']
  %s0 = inlined_call_operand.hbm [shape: bf16[32,64], index: 0, kind: input, shape index: {}]
  %s1 = inlined_call_operand.hbm [shape: bf16[64,128], index: 1, kind: input, shape index: {}]
  %s2 = inlined_call_operand.vmem [shape: f32[1,128], index: 2, kind: input, shape index: {}]
  %s3 = inlined_call_operand.hbm [shape: bf16[128,128], index: 3, kind: input, shape index: {}]
  %s4 = inlined_call_operand.vmem [shape: f32[1,128], index: 4, kind: input, shape index: {}]
  %s5 = inlined_call_operand.hbm [shape: bf16[32,128], index: 5, kind: output, shape index: {}]
  %s6 = sld [smem:[#allocation0]]
  $region42: #{tpu_custom_call.1} parent=0
    _
  %s8 = ssub.s32 1, %s6
  %s9 = scalar_select 0, %s8, %s6
  $region1: #{tpu_custom_call.1} parent=0
    #allocation2 [shape = 'u8[8192]{0}', space=vmem, size = 0x2000, scoped, tag = 'input window, operand 0, single buffered']
    #allocation3 [shape = 's32[1]{0}', space=sflag, size = 0x4, scoped, tag = 'scoped memory for tpu_custom_call.1']
    #allocation4 [shape = 's32[1]{0}', space=sflag, size = 0x4, scoped, tag = 'scoped memory for tpu_custom_call.1']
    #allocation5 [shape = 'u8[16384]{0}', space=vmem, size = 0x4000, scoped, tag = 'input window, operand 1, single buffered']
    #allocation6 [shape = 's32[1]{0}', space=sflag, size = 0x4, scoped, tag = 'scoped memory for tpu_custom_call.1']
    #allocation7 [shape = 'u8[32768]{0}', space=vmem, size = 0x8000, scoped, tag = 'input window, operand 3, single buffered']
    #allocation8 [shape = 'u8[8192]{0}', space=vmem, size = 0x2000, scoped, tag = 'output window, operand 0, single buffered']
    %10 = vsyncpa [#allocation3], 0
    %11 = vsyncpa [#allocation6], 0
    %12 = vsyncpa [#allocation4], 0
    // Predicated region
    $region2: #{tpu_custom_call.1} parent=1 // pred_check
      _
    $region3: #{tpu_custom_call.1} parent=1 // pred_check_branch
      %14 = sbr.rel (0) target = $region5
    $region4: #{tpu_custom_call.1} parent=1 // pred_region
      %16 = vsyncadd [#allocation3], 0
      %s17 = sshll.u32 %s0, 4
      %s18 = int_to_ptr.hbm [resolvable:$true] %s17
      %s19 = sshll.u32 [#allocation2], 4
      %s20 = int_to_ptr.vmem [resolvable:$true] %s19
      %25 = dma.hbm_to_vmem [thread:$0]  %s18, 256, %s20, [#allocation3], 64, 64, 4
    $region5: #{tpu_custom_call.1} parent=1 // pred_fallthru
      _
    // Predicated region
    $region6: #{tpu_custom_call.1} parent=1 // pred_check
      _
    $region7: #{tpu_custom_call.1} parent=1 // pred_check_branch
      %27 = sbr.rel (0) target = $region9
    $region8: #{tpu_custom_call.1} parent=1 // pred_region
      %29 = vsyncadd [#allocation6], 0
      %s30 = sshll.u32 %s1, 4
      %s31 = int_to_ptr.hbm [resolvable:$true] %s30
      %s32 = sshll.u32 [#allocation5], 4
      %s33 = int_to_ptr.vmem [resolvable:$true] %s32
      %38 = dma.hbm_to_vmem [thread:$0]  %s31, 512, %s33, [#allocation6], 64, 64, 4
    $region9: #{tpu_custom_call.1} parent=1 // pred_fallthru
      _
    // Predicated region
    $region10: #{tpu_custom_call.1} parent=1 // pred_check
      _
    $region11: #{tpu_custom_call.1} parent=1 // pred_check_branch
      %40 = sbr.rel (0) target = $region13
    $region12: #{tpu_custom_call.1} parent=1 // pred_region
      _
    $region13: #{tpu_custom_call.1} parent=1 // pred_fallthru
      _
    // Predicated region
    $region14: #{tpu_custom_call.1} parent=1 // pred_check
      _
    $region15: #{tpu_custom_call.1} parent=1 // pred_check_branch
      %42 = sbr.rel (0) target = $region17
    $region16: #{tpu_custom_call.1} parent=1 // pred_region
      %44 = vsyncadd [#allocation6], 0
      %s45 = sshll.u32 %s3, 4
      %s46 = int_to_ptr.hbm [resolvable:$true] %s45
      %s47 = sshll.u32 [#allocation7], 4
      %s48 = int_to_ptr.vmem [resolvable:$true] %s47
      %53 = dma.hbm_to_vmem [thread:$0]  %s46, 1024, %s48, [#allocation6], 64, 64, 4
    $region17: #{tpu_custom_call.1} parent=1 // pred_fallthru
      _
    // Predicated region
    $region18: #{tpu_custom_call.1} parent=1 // pred_check
      _
    $region19: #{tpu_custom_call.1} parent=1 // pred_check_branch
      %55 = sbr.rel (0) target = $region21
    $region20: #{tpu_custom_call.1} parent=1 // pred_region
      _
    $region21: #{tpu_custom_call.1} parent=1 // pred_fallthru
      _
    // Predicated region
    $region22: #{tpu_custom_call.1} parent=1 // pred_check
      _
    $region23: #{tpu_custom_call.1} parent=1 // pred_check_branch
      %57 = sbr.rel (0) target = $region25
    $region24: #{tpu_custom_call.1} parent=1 // pred_region
      %59 = dma.done [#allocation3], 256
    $region25: #{tpu_custom_call.1} parent=1 // pred_fallthru
      _
    // Predicated region
    $region26: #{tpu_custom_call.1} parent=1 // pred_check
      _
    $region27: #{tpu_custom_call.1} parent=1 // pred_check_branch
      %61 = sbr.rel (0) target = $region29
    $region28: #{tpu_custom_call.1} parent=1 // pred_region
      %63 = dma.done [#allocation6], 512
    $region29: #{tpu_custom_call.1} parent=1 // pred_fallthru
      _
    // Predicated region
    $region30: #{tpu_custom_call.1} parent=1 // pred_check
      _
    $region31: #{tpu_custom_call.1} parent=1 // pred_check_branch
      %65 = sbr.rel (0) target = $region33
    $region32: #{tpu_custom_call.1} parent=1 // pred_region
      %67 = dma.done [#allocation6], 1024
    $region33: #{tpu_custom_call.1} parent=1 // pred_fallthru
      _
    %v69 = vld [vmem:[#allocation2] sm:$0xf]
    %v70 = vld [vmem:[#allocation2 + $0x4] sm:$0xf]
    %v71 = vld [vmem:[#allocation2 + $0x8] sm:$0xf]
    %v72 = vld [vmem:[#allocation2 + $0xc] sm:$0xf]
    %v73 = vld [vmem:[#allocation5] sm:$0xf]
    %v74 = vld [vmem:[#allocation5 + $0x4] sm:$0xf]
    %v75 = vld [vmem:[#allocation5 + $0x8] sm:$0xf]
    %v76 = vld [vmem:[#allocation5 + $0xc] sm:$0xf]
    %v77 = vld [vmem:[#allocation5 + $0x10] sm:$0xf]
    %v78 = vld [vmem:[#allocation5 + $0x14] sm:$0xf]
    %v79 = vld [vmem:[#allocation5 + $0x18] sm:$0xf]
    %v80 = vld [vmem:[#allocation5 + $0x1c] sm:$0xf]
    %v81 = vld [vmem:[%s2] sm:$0x1]
    %v83 = vperm.slane %v81, 0
    %v89 = vunpack.c.l.b16 %v69
    %v90 = vunpack.c.l.b16 %v70
    %v91 = vunpack.c.l.b16 %v71
    %v92 = vunpack.c.l.b16 %v72
    %v93 = vpack.c.b16 %v90, %v89
    %v94 = vpack.c.b16 %v92, %v91
    %v103 = vunpack.c.l.b16 %v73
    %v104 = vunpack.c.l.b16 %v74
    %v105 = vunpack.c.l.b16 %v75
    %v106 = vunpack.c.l.b16 %v76
    %v107 = vunpack.c.l.b16 %v77
    %v108 = vunpack.c.l.b16 %v78
    %v109 = vunpack.c.l.b16 %v79
    %v110 = vunpack.c.l.b16 %v80
    %v111 = vpack.c.b16 %v104, %v103
    %v112 = vpack.c.b16 %v106, %v105
    %v113 = vpack.c.b16 %v108, %v107
    %v114 = vpack.c.b16 %v110, %v109
    %vm119 = vcmask 523264
    %v121 = vsel %vm119, %v93, 0
    %v124 = vsel %vm119, %v94, 0
    %126 = vmatpush.bf16.msra.mxu0 0
    %127 = vmatpush.bf16.msra.mxu0 0
    %128 = vmatpush.bf16.msra.mxu0 0
    %129 = vmatpush.bf16.msra.mxu0 0
    %130 = vmatpush.bf16.msra.mxu0 %v114
    %131 = vmatpush.bf16.msra.mxu0 %v113
    %132 = vmatpush.bf16.msra.mxu0 %v112
    %133 = vmatpush.bf16.msra.mxu0 %v111
    %134 = vmatmul.bf16.gmra.mxu0 %v121
    %v135 = vpop.f32.mrf.mxu0
    %v136 = vadd.f32 %v83, %v135
    %v137 = vpop.f32.mrf.mxu0
    %v138 = vadd.f32 %v83, %v137
    %139 = vmatmul.bf16.gmra.mxu0 %v124
    %v140 = vpop.f32.mrf.mxu0
    %v141 = vadd.f32 %v83, %v140
    %v142 = vpop.f32.mrf.mxu0
    %v143 = vadd.f32 %v83, %v142
    %144 = vdwg.mxu0
    %v145 = vpack.c.bf16 %v138, %v136
    %v146 = vpack.c.bf16 %v143, %v141
    %v147 = vld [vmem:[#allocation7] sm:$0xf]
    %v148 = vld [vmem:[#allocation7 + $0x4] sm:$0xf]
    %v149 = vld [vmem:[#allocation7 + $0x8] sm:$0xf]
    %v150 = vld [vmem:[#allocation7 + $0xc] sm:$0xf]
    %v151 = vld [vmem:[#allocation7 + $0x10] sm:$0xf]
    %v152 = vld [vmem:[#allocation7 + $0x14] sm:$0xf]
    %v153 = vld [vmem:[#allocation7 + $0x18] sm:$0xf]
    %v154 = vld [vmem:[#allocation7 + $0x1c] sm:$0xf]
    %v155 = vld [vmem:[#allocation7 + $0x20] sm:$0xf]
    %v156 = vld [vmem:[#allocation7 + $0x24] sm:$0xf]
    %v157 = vld [vmem:[#allocation7 + $0x28] sm:$0xf]
    %v158 = vld [vmem:[#allocation7 + $0x2c] sm:$0xf]
    %v159 = vld [vmem:[#allocation7 + $0x30] sm:$0xf]
    %v160 = vld [vmem:[#allocation7 + $0x34] sm:$0xf]
    %v161 = vld [vmem:[#allocation7 + $0x38] sm:$0xf]
    %v162 = vld [vmem:[#allocation7 + $0x3c] sm:$0xf]
    %v163 = vld [vmem:[%s4] sm:$0x1]
    %v165 = vperm.slane %v163, 0
    %v183 = vunpack.c.l.b16 %v147
    %v184 = vunpack.c.l.b16 %v148
    %v185 = vunpack.c.l.b16 %v149
    %v186 = vunpack.c.l.b16 %v150
    %v187 = vunpack.c.l.b16 %v151
    %v188 = vunpack.c.l.b16 %v152
    %v189 = vunpack.c.l.b16 %v153
    %v190 = vunpack.c.l.b16 %v154
    %v191 = vunpack.c.l.b16 %v155
    %v192 = vunpack.c.l.b16 %v156
    %v193 = vunpack.c.l.b16 %v157
    %v194 = vunpack.c.l.b16 %v158
    %v195 = vunpack.c.l.b16 %v159
    %v196 = vunpack.c.l.b16 %v160
    %v197 = vunpack.c.l.b16 %v161
    %v198 = vunpack.c.l.b16 %v162
    %v199 = vpack.c.b16 %v184, %v183
    %v200 = vpack.c.b16 %v186, %v185
    %v201 = vpack.c.b16 %v188, %v187
    %v202 = vpack.c.b16 %v190, %v189
    %v203 = vpack.c.b16 %v192, %v191
    %v204 = vpack.c.b16 %v194, %v193
    %v205 = vpack.c.b16 %v196, %v195
    %v206 = vpack.c.b16 %v198, %v197
    %215 = vmatpush.bf16.msra.mxu0 %v206
    %216 = vmatpush.bf16.msra.mxu0 %v205
    %217 = vmatpush.bf16.msra.mxu0 %v204
    %218 = vmatpush.bf16.msra.mxu0 %v203
    %219 = vmatpush.bf16.msra.mxu0 %v202
    %220 = vmatpush.bf16.msra.mxu0 %v201
    %221 = vmatpush.bf16.msra.mxu0 %v200
    %222 = vmatpush.bf16.msra.mxu0 %v199
    %223 = vmatmul.bf16.gmra.mxu0 %v145
    %v224 = vpop.f32.mrf.mxu0
    %v225 = vadd.f32 %v165, %v224
    %v226 = vpop.f32.mrf.mxu0
    %v227 = vadd.f32 %v165, %v226
    %228 = vmatmul.bf16.gmra.mxu0 %v146
    %v229 = vpop.f32.mrf.mxu0
    %v230 = vadd.f32 %v165, %v229
    %v231 = vpop.f32.mrf.mxu0
    %v232 = vadd.f32 %v165, %v231
    %233 = vdwg.mxu0
    %v234 = vpack.c.bf16 %v225, %v225
    %v235 = vpack.c.bf16 %v227, %v227
    %v236 = vpack.c.bf16 %v230, %v230
    %v237 = vpack.c.bf16 %v232, %v232
    %238 = vst [vmem:[#allocation8] sm:$0xf] %v234
    %239 = vst [vmem:[#allocation8 + $0x4] sm:$0xf] %v235
    %240 = vst [vmem:[#allocation8 + $0x8] sm:$0xf] %v236
    %241 = vst [vmem:[#allocation8 + $0xc] sm:$0xf] %v237
    // Predicated region
    $region34: #{tpu_custom_call.1} parent=1 // pred_check
      _
    $region35: #{tpu_custom_call.1} parent=1 // pred_check_branch
      %243 = sbr.rel (0) target = $region37
    $region36: #{tpu_custom_call.1} parent=1 // pred_region
      %245 = vsyncadd [#allocation4], 0
      %s246 = sshll.u32 [#allocation8], 4
      %s247 = int_to_ptr.vmem [resolvable:$true] %s246
      %s248 = sshll.u32 %s5, 4
      %s249 = int_to_ptr.hbm [resolvable:$true] %s248
      %254 = dma.vmem_to_hbm [thread:$0]  %s247, 256, %s249, [#allocation4], 64, 64, 4
    $region37: #{tpu_custom_call.1} parent=1 // pred_fallthru
      _
    // Predicated region
    $region38: #{tpu_custom_call.1} parent=1 // pred_check
      _
    $region39: #{tpu_custom_call.1} parent=1 // pred_check_branch
      %256 = sbr.rel (0) target = $region41
    $region40: #{tpu_custom_call.1} parent=1 // pred_region
      %258 = dma.done [#allocation4], 256
    $region41: #{tpu_custom_call.1} parent=1 // pred_fallthru
      _
    %259 = vsyncpa [#allocation3], 1
    %260 = vsyncpa [#allocation6], 1
    %261 = vsyncpa [#allocation4], 1

</llo_original>
